<compile_context>
chip_gen: v5e
topology: v5e:2x2
jax: 0.10.0
libtpu: 0.0.40
codegen_flags: <defaults>
</compile_context>

<pallas_src>
import math

import jax
import jax.numpy as jnp
from jax import lax
from jax.experimental import pallas as pl
from jax.experimental.pallas import tpu as pltpu

HIDDEN = 10
LANE = 128


def _value_net_kernel(x_ref,
                      w1_ref, b1_ref,
                      w2_ref, b2_ref,
                      w3_ref, b3_ref,
                      w4_ref, b4_ref,
                      o_ref):
    # x_ref : (TB, S)   batch on sublanes (caller's natural layout)
    # w1_ref: (H, S)    PyTorch (out, in) layout
    # w2/w3 : (H, H)
    # w4_ref: (H, 1)    final-layer weight as a column (VPU path)
    # b1..b3: (H, 1), b4: (1, 1)   -- f32
    # o_ref : (1, TB)   batch on lanes -> lane-dense store
    cdt = w1_ref.dtype  # matmul input dtype (f32 or bf16); accumulation is f32

    # Layer 1: h1^T = W1 . x^T, expressed by contracting the state_dim axis of
    # both operands ("A @ B^T" on the MXU) -- no explicit transpose of x.
    h = lax.dot_general(
        w1_ref[...], x_ref[...],
        dimension_numbers=(((1,), (1,)), ((), ())),
        preferred_element_type=jnp.float32)                    # (H, TB)
    h = jnp.maximum(h + b1_ref[...], 0.0)

    # Layers 2 & 3: plain (H,H) @ (H,TB) MXU matmuls.
    h = jnp.dot(w2_ref[...], h.astype(cdt),
                preferred_element_type=jnp.float32)
    h = jnp.maximum(h + b2_ref[...], 0.0)

    h = jnp.dot(w3_ref[...], h.astype(cdt),
                preferred_element_type=jnp.float32)
    h = jnp.maximum(h + b3_ref[...], 0.0)

    # Final 10 -> 1 layer: VPU broadcast-multiply + sublane reduction (XLU)
    # instead of an M=1 MXU matmul. Result is a lane-dense (1, TB) row.
    out = jnp.sum(h * w4_ref[...].astype(jnp.float32),
                  axis=0, keepdims=True) + b4_ref[...]
    o_ref[...] = out.astype(o_ref.dtype)


def value_network_forward(x, params, *, block_batch=4096):
    """Forward pass of the value MLP.

    x: (B, state_dim). Pass f32 for exact nn.Linear semantics; pass bf16
       (cast by the upstream producer, NOT here) to halve the input DMA
       bytes -- accumulation stays f32 either way.
    params: PyTorch-layout weights w{i}: (out, in), biases b{i}: (out, 1).
    Returns (B, 1) float32.
    """
    B, state_dim = x.shape
    cdt = x.dtype

    # ---- tile selection --------------------------------------------------
    b_ceil = max(LANE, pl.cdiv(B, LANE) * LANE)
    # Target ~block_batch rows per grid step (step-overhead amortization) ...
    tiles = max(1, pl.cdiv(b_ceil, block_batch))
    # ... but keep the tile count even when there are >= 2 lane-tiles of work
    # so the "parallel" batch axis can shard across both TCs on v7x.
    if tiles % 2 == 1 and b_ceil >= 2 * LANE:
        tiles += 1
    tb = pl.cdiv(b_ceil, tiles * LANE) * LANE      # multiple of 128 lanes
    b_pad = tb * tiles

    if b_pad != B:
        x = jnp.pad(x, ((0, b_pad - B), (0, 0)))

    # ---- params ------------------------------------------------------------
    # Weights feed the MXU in x's dtype. They are tiny (< 1 KB each), so this
    # wrapper-side cast is negligible; x itself is never cast or re-laid-out
    # here (that would re-read/re-write all of x in HBM).
    w1 = params["w1"].astype(cdt)
    w2 = params["w2"].astype(cdt)
    w3 = params["w3"].astype(cdt)
    w4_col = params["w4"].reshape(1, HIDDEN).T.astype(cdt)   # (H, 1) column
    b1 = params["b1"].astype(jnp.float32)
    b2 = params["b2"].astype(jnp.float32)
    b3 = params["b3"].astype(jnp.float32)
    b4 = params["b4"].astype(jnp.float32)

    def resident(arr):
        # Constant index map -> block never changes -> stays VMEM-resident
        # across all grid steps (no re-DMA).
        return pl.BlockSpec(arr.shape, lambda i: (0, 0))

    flops = 2 * b_pad * (state_dim * HIDDEN + 2 * HIDDEN * HIDDEN + HIDDEN)
    param_bytes = sum(int(a.size) * a.dtype.itemsize
                      for a in (w1, b1, w2, b2, w3, b3, w4_col, b4))
    bytes_accessed = int(x.size) * x.dtype.itemsize + 4 * b_pad + param_bytes

    out = pl.pallas_call(
        _value_net_kernel,
        out_shape=jax.ShapeDtypeStruct((1, b_pad), jnp.float32),
        grid=(tiles,),
        in_specs=[
            # Streamed x tile; default double-buffering hides its DMA.
            pl.BlockSpec((tb, state_dim), lambda i: (i, 0)),
            resident(w1), resident(b1),
            resident(w2), resident(b2),
            resident(w3), resident(b3),
            resident(w4_col), resident(b4),
        ],
        # Lane-dense output row: block (1, tb) of the (1, b_pad) result.
        out_specs=pl.BlockSpec((1, tb), lambda i: (0, i)),
        compiler_params=pltpu.CompilerParams(
            # Batch tiles are independent -> shard across v7x's two TCs.
            dimension_semantics=("parallel",),
            # Raise v5e's 16 MiB scoped-VMEM default; matches v6e/v7x.
            vmem_limit_bytes=32 * 1024 * 1024),
        cost_estimate=pl.CostEstimate(
            flops=int(flops), transcendentals=0,
            bytes_accessed=int(bytes_accessed)),
    )(x, w1, b1, w2, b2, w3, b3, w4_col, b4)

    return out[0, :B][:, None]


def init_params(key, state_dimension):
    """nn.Linear-style init: U(-1/sqrt(fan_in), 1/sqrt(fan_in)), (out,in)/(out,1)."""
    dims = [(state_dimension, HIDDEN), (HIDDEN, HIDDEN),
            (HIDDEN, HIDDEN), (HIDDEN, 1)]
    params = {}
    for idx, (fan_in, fan_out) in enumerate(dims, start=1):
        key, kw, kb = jax.random.split(key, 3)
        bound = 1.0 / math.sqrt(fan_in)
        params[f"w{idx}"] = jax.random.uniform(
            kw, (fan_out, fan_in), jnp.float32, minval=-bound, maxval=bound)
        params[f"b{idx}"] = jax.random.uniform(
            kb, (fan_out, 1), jnp.float32, minval=-bound, maxval=bound)
    return params


def _reference_forward(x, params):
    h = jnp.maximum(x @ params["w1"].T + params["b1"].T, 0.0)
    h = jnp.maximum(h @ params["w2"].T + params["b2"].T, 0.0)
    h = jnp.maximum(h @ params["w3"].T + params["b3"].T, 0.0)
    return h @ params["w4"].T + params["b4"].T


if __name__ == "__main__":
    state_dimension = 4
    batch = 8

    key = jax.random.PRNGKey(0)
    key, kx = jax.random.split(key)
    x = jax.random.normal(kx, (batch, state_dimension), jnp.float32)
    params = init_params(key, state_dimension)

    # Small batch (single 128-row tile, heavy padding -- sliced off).
    out = jax.block_until_ready(value_network_forward(x, params))
    ref = _reference_forward(x, params)
    assert out.shape == (batch, 1), out.shape
    assert jnp.allclose(out, ref, atol=1e-5, rtol=1e-5), "mismatch vs reference"

    # Batch not divisible by the tile: exercises multi-tile grid (2 tiles of
    # 256 here -> even tile count for v7x megacore) + padding.
    key, kx2 = jax.random.split(key)
    x_big = jax.random.normal(kx2, (300, state_dimension), jnp.float32)
    out_big = jax.block_until_ready(value_network_forward(x_big, params))
    ref_big = _reference_forward(x_big, params)
    assert out_big.shape == (300, 1), out_big.shape
    assert jnp.allclose(out_big, ref_big, atol=1e-5, rtol=1e-5), "tiled mismatch"

    # bf16 input path: the CALLER supplies bf16 x (halved input DMA bytes);
    # matmuls run bf16 with f32 accumulation. Precision of x itself is
    # reduced, hence the loose tolerance.
    out_bf16 = jax.block_until_ready(
        value_network_forward(x_big.astype(jnp.bfloat16), params))
    assert out_bf16.shape == (300, 1), out_bf16.shape
    assert jnp.allclose(out_bf16, ref_big, atol=1e-1, rtol=1e-1), "bf16 mismatch"

    print("KERNEL_OK")
</pallas_src>

<mosaic_0001>
module attributes {stable_mosaic.version = 11 : i64} {
  func.func @_value_net_kernel(%arg0: i32, %arg1: memref<128x4xf32, #tpu.memory_space<vmem>>, %arg2: memref<10x4xf32, #tpu.memory_space<vmem>>, %arg3: memref<10x1xf32, #tpu.memory_space<vmem>>, %arg4: memref<10x10xf32, #tpu.memory_space<vmem>>, %arg5: memref<10x1xf32, #tpu.memory_space<vmem>>, %arg6: memref<10x10xf32, #tpu.memory_space<vmem>>, %arg7: memref<10x1xf32, #tpu.memory_space<vmem>>, %arg8: memref<10x1xf32, #tpu.memory_space<vmem>>, %arg9: memref<1x1xf32, #tpu.memory_space<vmem>>, %arg10: memref<1x128xf32, #tpu.memory_space<vmem>>) attributes {dimension_semantics = [#tpu.dimension_semantics<parallel>], iteration_bounds = array<i64: 1>, scalar_prefetch = 0 : i64, scratch_operands = 0 : i64, tpu.core_type = #tpu.core_type<tc>, window_params = [{transform_indices = @transform_0, window_bounds = array<i64: 128, 4>}, {pipeline_mode = #tpu.pipeline_mode<synchronous>, transform_indices = @transform_1, window_bounds = array<i64: 10, 4>}, {pipeline_mode = #tpu.pipeline_mode<synchronous>, transform_indices = @transform_2, window_bounds = array<i64: 10, 1>}, {pipeline_mode = #tpu.pipeline_mode<synchronous>, transform_indices = @transform_3, window_bounds = array<i64: 10, 10>}, {pipeline_mode = #tpu.pipeline_mode<synchronous>, transform_indices = @transform_4, window_bounds = array<i64: 10, 1>}, {pipeline_mode = #tpu.pipeline_mode<synchronous>, transform_indices = @transform_5, window_bounds = array<i64: 10, 10>}, {pipeline_mode = #tpu.pipeline_mode<synchronous>, transform_indices = @transform_6, window_bounds = array<i64: 10, 1>}, {pipeline_mode = #tpu.pipeline_mode<synchronous>, transform_indices = @transform_7, window_bounds = array<i64: 10, 1>}, {pipeline_mode = #tpu.pipeline_mode<synchronous>, transform_indices = @transform_8, window_bounds = array<i64: 1, 1>}, {transform_indices = @transform_9, window_bounds = array<i64: 1, 128>}]} {
    %c0 = arith.constant 0 : index
    %c0_0 = arith.constant 0 : index
    %0 = vector.load %arg2[%c0, %c0_0] : memref<10x4xf32, #tpu.memory_space<vmem>>, vector<10x4xf32>
    %c0_1 = arith.constant 0 : index
    %c0_2 = arith.constant 0 : index
    %1 = vector.load %arg1[%c0_1, %c0_2] : memref<128x4xf32, #tpu.memory_space<vmem>>, vector<128x4xf32>
    %cst = arith.constant dense<0.000000e+00> : vector<10x128xf32>
    %2 = tpu.matmul %0, %1, %cst {dimension_numbers = #tpu.dot_dimension_numbers<[1], [1], [0], [0], [0, 0, 1, 0], [], []>} : vector<10x4xf32>, vector<128x4xf32>, vector<10x128xf32> -> vector<10x128xf32>
    %c0_3 = arith.constant 0 : index
    %c0_4 = arith.constant 0 : index
    %3 = vector.load %arg3[%c0_3, %c0_4] : memref<10x1xf32, #tpu.memory_space<vmem>>, vector<10x1xf32>
    %4 = vector.broadcast %3 : vector<10x1xf32> to vector<10x128xf32>
    %5 = arith.addf %2, %4 : vector<10x128xf32>
    %cst_5 = arith.constant 0.000000e+00 : f32
    %6 = vector.broadcast %cst_5 : f32 to vector<10x128xf32>
    %7 = arith.maximumf %5, %6 : vector<10x128xf32>
    %c0_6 = arith.constant 0 : index
    %c0_7 = arith.constant 0 : index
    %8 = vector.load %arg4[%c0_6, %c0_7] : memref<10x10xf32, #tpu.memory_space<vmem>>, vector<10x10xf32>
    %cst_8 = arith.constant dense<0.000000e+00> : vector<10x128xf32>
    %9 = tpu.matmul %8, %7, %cst_8 {dimension_numbers = #tpu.dot_dimension_numbers<[1], [0], [0], [1], [0, 0, 1, 1], [], []>} : vector<10x10xf32>, vector<10x128xf32>, vector<10x128xf32> -> vector<10x128xf32>
    %c0_9 = arith.constant 0 : index
    %c0_10 = arith.constant 0 : index
    %10 = vector.load %arg5[%c0_9, %c0_10] : memref<10x1xf32, #tpu.memory_space<vmem>>, vector<10x1xf32>
    %11 = vector.broadcast %10 : vector<10x1xf32> to vector<10x128xf32>
    %12 = arith.addf %9, %11 : vector<10x128xf32>
    %cst_11 = arith.constant 0.000000e+00 : f32
    %13 = vector.broadcast %cst_11 : f32 to vector<10x128xf32>
    %14 = arith.maximumf %12, %13 : vector<10x128xf32>
    %c0_12 = arith.constant 0 : index
    %c0_13 = arith.constant 0 : index
    %15 = vector.load %arg6[%c0_12, %c0_13] : memref<10x10xf32, #tpu.memory_space<vmem>>, vector<10x10xf32>
    %cst_14 = arith.constant dense<0.000000e+00> : vector<10x128xf32>
    %16 = tpu.matmul %15, %14, %cst_14 {dimension_numbers = #tpu.dot_dimension_numbers<[1], [0], [0], [1], [0, 0, 1, 1], [], []>} : vector<10x10xf32>, vector<10x128xf32>, vector<10x128xf32> -> vector<10x128xf32>
    %c0_15 = arith.constant 0 : index
    %c0_16 = arith.constant 0 : index
    %17 = vector.load %arg7[%c0_15, %c0_16] : memref<10x1xf32, #tpu.memory_space<vmem>>, vector<10x1xf32>
    %18 = vector.broadcast %17 : vector<10x1xf32> to vector<10x128xf32>
    %19 = arith.addf %16, %18 : vector<10x128xf32>
    %cst_17 = arith.constant 0.000000e+00 : f32
    %20 = vector.broadcast %cst_17 : f32 to vector<10x128xf32>
    %21 = arith.maximumf %19, %20 : vector<10x128xf32>
    %c0_18 = arith.constant 0 : index
    %c0_19 = arith.constant 0 : index
    %22 = vector.load %arg8[%c0_18, %c0_19] : memref<10x1xf32, #tpu.memory_space<vmem>>, vector<10x1xf32>
    %23 = vector.broadcast %22 : vector<10x1xf32> to vector<10x128xf32>
    %24 = arith.mulf %21, %23 : vector<10x128xf32>
    %cst_20 = arith.constant dense<0.000000e+00> : vector<128xf32>
    %25 = vector.multi_reduction <add>, %24, %cst_20 [0] : vector<10x128xf32> to vector<128xf32>
    %26 = vector.shape_cast %25 : vector<128xf32> to vector<1x128xf32>
    %c0_21 = arith.constant 0 : index
    %c0_22 = arith.constant 0 : index
    %27 = vector.load %arg9[%c0_21, %c0_22] : memref<1x1xf32, #tpu.memory_space<vmem>>, vector<1x1xf32>
    %28 = vector.broadcast %27 : vector<1x1xf32> to vector<1x128xf32>
    %29 = arith.addf %26, %28 : vector<1x128xf32>
    %c0_23 = arith.constant 0 : index
    %c0_24 = arith.constant 0 : index
    %30 = vector.load %arg10[%c0_23, %c0_24] : memref<1x128xf32, #tpu.memory_space<vmem>>, vector<1x128xf32>
    tpu.vector_store %arg10[%c0_23, %c0_24], %29 {strides = array<i32>} : memref<1x128xf32, #tpu.memory_space<vmem>>, vector<1x128xf32>,
    return
  }
  func.func @transform_0(%arg0: i32) -> (i32, i32) {
    %c0_i32 = arith.constant 0 : i32
    %c0_i32_0 = arith.constant 0 : i32
    return %arg0, %c0_i32 : i32, i32
  }
  func.func @transform_1(%arg0: i32) -> (i32, i32) {
    %c0_i32 = arith.constant 0 : i32
    %c0_i32_0 = arith.constant 0 : i32
    %c0_i32_1 = arith.constant 0 : i32
    return %c0_i32, %c0_i32_0 : i32, i32
  }
  func.func @transform_2(%arg0: i32) -> (i32, i32) {
    %c0_i32 = arith.constant 0 : i32
    %c0_i32_0 = arith.constant 0 : i32
    %c0_i32_1 = arith.constant 0 : i32
    return %c0_i32, %c0_i32_0 : i32, i32
  }
  func.func @transform_3(%arg0: i32) -> (i32, i32) {
    %c0_i32 = arith.constant 0 : i32
    %c0_i32_0 = arith.constant 0 : i32
    %c0_i32_1 = arith.constant 0 : i32
    return %c0_i32, %c0_i32_0 : i32, i32
  }
  func.func @transform_4(%arg0: i32) -> (i32, i32) {
    %c0_i32 = arith.constant 0 : i32
    %c0_i32_0 = arith.constant 0 : i32
    %c0_i32_1 = arith.constant 0 : i32
    return %c0_i32, %c0_i32_0 : i32, i32
  }
  func.func @transform_5(%arg0: i32) -> (i32, i32) {
    %c0_i32 = arith.constant 0 : i32
    %c0_i32_0 = arith.constant 0 : i32
    %c0_i32_1 = arith.constant 0 : i32
    return %c0_i32, %c0_i32_0 : i32, i32
  }
  func.func @transform_6(%arg0: i32) -> (i32, i32) {
    %c0_i32 = arith.constant 0 : i32
    %c0_i32_0 = arith.constant 0 : i32
    %c0_i32_1 = arith.constant 0 : i32
    return %c0_i32, %c0_i32_0 : i32, i32
  }
  func.func @transform_7(%arg0: i32) -> (i32, i32) {
    %c0_i32 = arith.constant 0 : i32
    %c0_i32_0 = arith.constant 0 : i32
    %c0_i32_1 = arith.constant 0 : i32
    return %c0_i32, %c0_i32_0 : i32, i32
  }
  func.func @transform_8(%arg0: i32) -> (i32, i32) {
    %c0_i32 = arith.constant 0 : i32
    %c0_i32_0 = arith.constant 0 : i32
    %c0_i32_1 = arith.constant 0 : i32
    return %c0_i32, %c0_i32_0 : i32, i32
  }
  func.func @transform_9(%arg0: i32) -> (i32, i32) {
    %c0_i32 = arith.constant 0 : i32
    %c0_i32_0 = arith.constant 0 : i32
    return %c0_i32, %arg0 : i32, i32
  }
}

</mosaic_0001>

<llo_original>
// kernel: tpu_custom_call.1
$region0: #{tpu_custom_call.1}
  #allocation0 [shape = 'u32[]', space=smem, size = 0x4, offset = 0x4, fixed_abs, tag = 'smem constant byte address 0x4 - core index']
  #allocation1 [shape = 'u32[72,128]{1,0:T(1,128)}', space=vmem, size = 0x9000, scoped, tag = 'internal scratch']
  #allocation2 [shape = 'f32[1,1]{1,0:T(1,128)S(1)}', space=vmem, size = 0x200, scoped, tag = 'scoped memory for tpu_custom_call.1']
  %s0 = inlined_call_operand.vmem [shape: f32[128,4], index: 0, kind: input, shape index: {}]
  %s1 = inlined_call_operand.vmem [shape: f32[10,4], index: 1, kind: input, shape index: {}]
  %s2 = inlined_call_operand.vmem [shape: f32[10,1], index: 2, kind: input, shape index: {}]
  %s3 = inlined_call_operand.vmem [shape: f32[10,10], index: 3, kind: input, shape index: {}]
  %s4 = inlined_call_operand.vmem [shape: f32[10,1], index: 4, kind: input, shape index: {}]
  %s5 = inlined_call_operand.vmem [shape: f32[10,10], index: 5, kind: input, shape index: {}]
  %s6 = inlined_call_operand.vmem [shape: f32[10,1], index: 6, kind: input, shape index: {}]
  %s7 = inlined_call_operand.vmem [shape: f32[10,1], index: 7, kind: input, shape index: {}]
  %s8 = inlined_call_operand.<no memory space> [shape: f32[1,1], index: 8, kind: input, shape index: {}]
  %s9 = inlined_call_operand.hbm [shape: f32[1,128], index: 9, kind: output, shape index: {}]
  %s10 = sld [smem:[#allocation0]]
  $region46: #{tpu_custom_call.1} parent=0
    _
  %s12 = ssub.s32 1, %s10
  %s13 = scalar_select 0, %s12, %s10
  %v14 = vstv %s8
  %15 = vst [vmem:[#allocation2] sm:$0x1] %v14
  $region1: #{tpu_custom_call.1} parent=0
    #allocation3 [shape = 'u8[512]{0}', space=vmem, size = 0x400, scoped, tag = 'output window, operand 0, single buffered']
    #allocation4 [shape = 's32[1]{0}', space=sflag, size = 0x4, scoped, tag = 'scoped memory for tpu_custom_call.1']
    %16 = vsyncpa [#allocation4], 0
    // Predicated region
    $region2: #{tpu_custom_call.1} parent=1 // pred_check
      _
    $region3: #{tpu_custom_call.1} parent=1 // pred_check_branch
      %18 = sbr.rel (0) target = $region5
    $region4: #{tpu_custom_call.1} parent=1 // pred_region
      _
    $region5: #{tpu_custom_call.1} parent=1 // pred_fallthru
      _
    // Predicated region
    $region6: #{tpu_custom_call.1} parent=1 // pred_check
      _
    $region7: #{tpu_custom_call.1} parent=1 // pred_check_branch
      %20 = sbr.rel (0) target = $region9
    $region8: #{tpu_custom_call.1} parent=1 // pred_region
      _
    $region9: #{tpu_custom_call.1} parent=1 // pred_fallthru
      _
    // Predicated region
    $region10: #{tpu_custom_call.1} parent=1 // pred_check
      _
    $region11: #{tpu_custom_call.1} parent=1 // pred_check_branch
      %22 = sbr.rel (0) target = $region13
    $region12: #{tpu_custom_call.1} parent=1 // pred_region
      _
    $region13: #{tpu_custom_call.1} parent=1 // pred_fallthru
      _
    // Predicated region
    $region14: #{tpu_custom_call.1} parent=1 // pred_check
      _
    $region15: #{tpu_custom_call.1} parent=1 // pred_check_branch
      %24 = sbr.rel (0) target = $region17
    $region16: #{tpu_custom_call.1} parent=1 // pred_region
      _
    $region17: #{tpu_custom_call.1} parent=1 // pred_fallthru
      _
    // Predicated region
    $region18: #{tpu_custom_call.1} parent=1 // pred_check
      _
    $region19: #{tpu_custom_call.1} parent=1 // pred_check_branch
      %26 = sbr.rel (0) target = $region21
    $region20: #{tpu_custom_call.1} parent=1 // pred_region
      _
    $region21: #{tpu_custom_call.1} parent=1 // pred_fallthru
      _
    // Predicated region
    $region22: #{tpu_custom_call.1} parent=1 // pred_check
      _
    $region23: #{tpu_custom_call.1} parent=1 // pred_check_branch
      %28 = sbr.rel (0) target = $region25
    $region24: #{tpu_custom_call.1} parent=1 // pred_region
      _
    $region25: #{tpu_custom_call.1} parent=1 // pred_fallthru
      _
    // Predicated region
    $region26: #{tpu_custom_call.1} parent=1 // pred_check
      _
    $region27: #{tpu_custom_call.1} parent=1 // pred_check_branch
      %30 = sbr.rel (0) target = $region29
    $region28: #{tpu_custom_call.1} parent=1 // pred_region
      _
    $region29: #{tpu_custom_call.1} parent=1 // pred_fallthru
      _
    // Predicated region
    $region30: #{tpu_custom_call.1} parent=1 // pred_check
      _
    $region31: #{tpu_custom_call.1} parent=1 // pred_check_branch
      %32 = sbr.rel (0) target = $region33
    $region32: #{tpu_custom_call.1} parent=1 // pred_region
      _
    $region33: #{tpu_custom_call.1} parent=1 // pred_fallthru
      _
    // Predicated region
    $region34: #{tpu_custom_call.1} parent=1 // pred_check
      _
    $region35: #{tpu_custom_call.1} parent=1 // pred_check_branch
      %34 = sbr.rel (0) target = $region37
    $region36: #{tpu_custom_call.1} parent=1 // pred_region
      _
    $region37: #{tpu_custom_call.1} parent=1 // pred_fallthru
      _
    %v35 = vld [vmem:[%s1] sm:$0xff]
    %v36 = vld [vmem:[%s1 + $0x8] sm:$0x3]
    %v37 = vld [vmem:[%s0] sm:$0xff]
    %v38 = vld [vmem:[%s0 + $0x8] sm:$0xff]
    %v39 = vld [vmem:[%s0 + $0x10] sm:$0xff]
    %v40 = vld [vmem:[%s0 + $0x18] sm:$0xff]
    %v41 = vld [vmem:[%s0 + $0x20] sm:$0xff]
    %v42 = vld [vmem:[%s0 + $0x28] sm:$0xff]
    %v43 = vld [vmem:[%s0 + $0x30] sm:$0xff]
    %v44 = vld [vmem:[%s0 + $0x38] sm:$0xff]
    %v45 = vld [vmem:[%s0 + $0x40] sm:$0xff]
    %v46 = vld [vmem:[%s0 + $0x48] sm:$0xff]
    %v47 = vld [vmem:[%s0 + $0x50] sm:$0xff]
    %v48 = vld [vmem:[%s0 + $0x58] sm:$0xff]
    %v49 = vld [vmem:[%s0 + $0x60] sm:$0xff]
    %v50 = vld [vmem:[%s0 + $0x68] sm:$0xff]
    %v51 = vld [vmem:[%s0 + $0x70] sm:$0xff]
    %v52 = vld [vmem:[%s0 + $0x78] sm:$0xff]
    %v53 = vld [vmem:[%s2] sm:$0xff]
    %v54 = vld [vmem:[%s2 + $0x8] sm:$0x3]
    %56 = vset.pattern.permute.xlu0 0
    %57 = vperm.xlu0 %56, %v53
    %v58 = vpop.permute.xlu0 %57
    %61 = vset.pattern.permute.xlu0 0
    %62 = vperm.xlu0 %61, %v54
    %v63 = vpop.permute.xlu0 %62
    %vm65 = vcmask 31744
    %v67 = vsel %vm65, %v35, 0
    %v70 = vsel %vm65, %v36, 0
    %v73 = vsel %vm65, %v37, 0
    %v76 = vsel %vm65, %v38, 0
    %v79 = vsel %vm65, %v39, 0
    %v82 = vsel %vm65, %v40, 0
    %v85 = vsel %vm65, %v41, 0
    %v88 = vsel %vm65, %v42, 0
    %v91 = vsel %vm65, %v43, 0
    %v94 = vsel %vm65, %v44, 0
    %v97 = vsel %vm65, %v45, 0
    %v100 = vsel %vm65, %v46, 0
    %v103 = vsel %vm65, %v47, 0
    %v106 = vsel %vm65, %v48, 0
    %v109 = vsel %vm65, %v49, 0
    %v112 = vsel %vm65, %v50, 0
    %v115 = vsel %vm65, %v51, 0
    %v118 = vsel %vm65, %v52, 0
    %120 = vmatpush.xpose.msra.mxu0 %v118
    %121 = vmatpush.xpose.msra.mxu0 %v115
    %122 = vmatpush.xpose.msra.mxu0 %v112
    %123 = vmatpush.xpose.msra.mxu0 %v109
    %124 = vmatpush.xpose.msra.mxu0 %v106
    %125 = vmatpush.xpose.msra.mxu0 %v103
    %126 = vmatpush.xpose.msra.mxu0 %v100
    %127 = vmatpush.xpose.msra.mxu0 %v97
    %128 = vmatpush.xpose.msra.mxu0 %v94
    %129 = vmatpush.xpose.msra.mxu0 %v91
    %130 = vmatpush.xpose.msra.mxu0 %v88
    %131 = vmatpush.xpose.msra.mxu0 %v85
    %132 = vmatpush.xpose.msra.mxu0 %v82
    %133 = vmatpush.xpose.msra.mxu0 %v79
    %134 = vmatpush.xpose.msra.mxu0 %v76
    %135 = vmatpush.xpose.msra.mxu0 %v73
    %136 = vmatmul.f32.gmra.mxu0 %v67
    %v137 = vpop.f32.mrf.mxu0
    %v138 = vadd.f32 %v58, %v137
    %139 = vmatmul.f32.gmra.mxu0 %v70
    %v140 = vpop.f32.mrf.mxu0
    %v141 = vadd.f32 %v63, %v140
    %142 = vdwg.mxu0
    %v143 = vmax.f32 %v138, 0.0
    %v144 = vmax.f32 %v141, 0.0
    %v145 = vld [vmem:[%s3] sm:$0xff]
    %v146 = vld [vmem:[%s3 + $0x8] sm:$0x3]
    %v147 = vld [vmem:[%s4] sm:$0xff]
    %v148 = vld [vmem:[%s4 + $0x8] sm:$0x3]
    %150 = vset.pattern.permute.xlu0 0
    %151 = vperm.xlu0 %150, %v147
    %v152 = vpop.permute.xlu0 %151
    %155 = vset.pattern.permute.xlu0 0
    %156 = vperm.xlu0 %155, %v148
    %v157 = vpop.permute.xlu0 %156
    %vm159 = vcmask 80896
    %v161 = vsel %vm159, %v145, 0
    %v164 = vsel %vm159, %v146, 0
    %vm166 = vcmask 1041408
    %v168 = vsel %vm166, %v144, 0
    %170 = vmatpush.msra.mxu0 0.0
    %171 = vmatpush.msra.mxu0 0.0
    %172 = vmatpush.msra.mxu0 0.0
    %173 = vmatpush.msra.mxu0 0.0
    %174 = vmatpush.msra.mxu0 0.0
    %175 = vmatpush.msra.mxu0 0.0
    %176 = vmatpush.msra.mxu0 0.0
    %177 = vmatpush.msra.mxu0 0.0
    %178 = vmatpush.msra.mxu0 0.0
    %179 = vmatpush.msra.mxu0 0.0
    %180 = vmatpush.msra.mxu0 0.0
    %181 = vmatpush.msra.mxu0 0.0
    %182 = vmatpush.msra.mxu0 0.0
    %183 = vmatpush.msra.mxu0 0.0
    %184 = vmatpush.msra.mxu0 %v168
    %185 = vmatpush.msra.mxu0 %v143
    %186 = vmatmul.f32.gmra.mxu0 %v161
    %v187 = vpop.f32.mrf.mxu0
    %v188 = vadd.f32 %v152, %v187
    %189 = vmatmul.f32.gmra.mxu0 %v164
    %v190 = vpop.f32.mrf.mxu0
    %v191 = vadd.f32 %v157, %v190
    %192 = vdwg.mxu0
    %v193 = vmax.f32 %v188, 0.0
    %v194 = vmax.f32 %v191, 0.0
    %v195 = vld [vmem:[%s5] sm:$0xff]
    %v196 = vld [vmem:[%s5 + $0x8] sm:$0x3]
    %v197 = vld [vmem:[%s6] sm:$0xff]
    %v198 = vld [vmem:[%s6 + $0x8] sm:$0x3]
    %200 = vset.pattern.permute.xlu0 0
    %201 = vperm.xlu0 %200, %v197
    %v202 = vpop.permute.xlu0 %201
    %205 = vset.pattern.permute.xlu0 0
    %206 = vperm.xlu0 %205, %v198
    %v207 = vpop.permute.xlu0 %206
    %v210 = vsel %vm159, %v195, 0
    %v213 = vsel %vm159, %v196, 0
    %v216 = vsel %vm166, %v194, 0
    %218 = vmatpush.msra.mxu0 0.0
    %219 = vmatpush.msra.mxu0 0.0
    %220 = vmatpush.msra.mxu0 0.0
    %221 = vmatpush.msra.mxu0 0.0
    %222 = vmatpush.msra.mxu0 0.0
    %223 = vmatpush.msra.mxu0 0.0
    %224 = vmatpush.msra.mxu0 0.0
    %225 = vmatpush.msra.mxu0 0.0
    %226 = vmatpush.msra.mxu0 0.0
    %227 = vmatpush.msra.mxu0 0.0
    %228 = vmatpush.msra.mxu0 0.0
    %229 = vmatpush.msra.mxu0 0.0
    %230 = vmatpush.msra.mxu0 0.0
    %231 = vmatpush.msra.mxu0 0.0
    %232 = vmatpush.msra.mxu0 %v216
    %233 = vmatpush.msra.mxu0 %v193
    %234 = vmatmul.f32.gmra.mxu0 %v210
    %v235 = vpop.f32.mrf.mxu0
    %v236 = vadd.f32 %v202, %v235
    %237 = vmatmul.f32.gmra.mxu0 %v213
    %v238 = vpop.f32.mrf.mxu0
    %v239 = vadd.f32 %v207, %v238
    %240 = vdwg.mxu0
    %v241 = vmax.f32 %v236, 0.0
    %v242 = vmax.f32 %v239, 0.0
    %v243 = vld [vmem:[%s7] sm:$0xff]
    %v244 = vld [vmem:[%s7 + $0x8] sm:$0x3]
    %246 = vset.pattern.permute.xlu0 0
    %247 = vperm.xlu0 %246, %v243
    %v248 = vpop.permute.xlu0 %247
    %251 = vset.pattern.permute.xlu0 0
    %252 = vperm.xlu0 %251, %v244
    %v253 = vpop.permute.xlu0 %252
    %v255 = vmul.f32 %v241, %v248
    %v256 = vmul.f32 %v242, %v253
    %v257 = vsel %vm166, %v256, 0.0
    %v258 = vadd.f32 %v255, %v257
    %v259 = vrot.slane %v258, 4
    %v260 = vadd.f32 %v258, %v259
    %v261 = vrot.slane %v260, 2
    %v262 = vadd.f32 %v260, %v261
    %v263 = vrot.slane %v262, 1
    %v264 = vadd.f32 %v262, %v263
    %v265 = vld [vmem:[#allocation2] sm:$0x1]
    %267 = vset.pattern.permute.xlu0 0
    %268 = vperm.xlu0 %267, %v265
    %v269 = vpop.permute.xlu0 %268
    %v271 = vperm.slane %v269, 0
    %v272 = vadd.f32 %v264, %v271
    %273 = vst [vmem:[#allocation3] sm:$0x1] %v272
    // Predicated region
    $region38: #{tpu_custom_call.1} parent=1 // pred_check
      _
    $region39: #{tpu_custom_call.1} parent=1 // pred_check_branch
      %275 = sbr.rel (0) target = $region41
    $region40: #{tpu_custom_call.1} parent=1 // pred_region
      %277 = vsyncadd [#allocation4], 0
      %s279 = sshll.u32 [#allocation3], 4
      %s280 = int_to_ptr.vmem [resolvable:$true] %s279
      %s281 = sshll.u32 %s9, 4
      %s282 = int_to_ptr.hbm [resolvable:$true] %s281
      %284 = dma.vmem_to_hbm [thread:$0]  %s280, 16, %s282, [#allocation4]
    $region41: #{tpu_custom_call.1} parent=1 // pred_fallthru
      _
    // Predicated region
    $region42: #{tpu_custom_call.1} parent=1 // pred_check
      _
    $region43: #{tpu_custom_call.1} parent=1 // pred_check_branch
      %286 = sbr.rel (0) target = $region45
    $region44: #{tpu_custom_call.1} parent=1 // pred_region
      %288 = dma.done [#allocation4], 16
    $region45: #{tpu_custom_call.1} parent=1 // pred_fallthru
      _
    %289 = vsyncpa [#allocation4], 1

</llo_original>
